<compile_context>
chip_gen: v7x
topology: tpu7x:2x2x1
jax: 0.10.0
libtpu: 0.0.40
codegen_flags: <defaults>
</compile_context>

<pallas_src>
import functools

import jax
import jax.numpy as jnp
from jax.experimental import pallas as pl
from jax.experimental.pallas import tpu as pltpu

DROP_P = 0.2
# keep iff uint8 bits >= 51  ->  P(keep) = 205/256 ~= 0.8 (error ~0.1%, within
# dropout noise).  Plain Python int so the kernel sees a literal, not a
# captured array constant.
DROP_THRESHOLD_U8 = 51


def _round_up(n, m):
    return (n + m - 1) // m * m


def encoder_kernel(xt_ref,     # [6,  TB] f32   x^T tile (batch on lanes)
                   bits_ref,   # [15, TB] u8    dropout random bits
                   w12_ref,    # [15, 6]  f32   fused fc1∘fc2 weight (W2 @ W1)
                   b12_ref,    # [15, 1]  f32   fused fc1∘fc2 bias
                   w3_ref,     # [20, 15] f32   fc3 weight * 1/(1-p)
                   b3_ref,     # [20, 1]  f32   fc3 bias
                   out_ref):   # [20, TB] f32   out^T tile
    # fused fc1 + fc2 in the transposed layout: [15,6] @ [6,TB] -> [15,TB]
    h = jnp.dot(w12_ref[...], xt_ref[...],
                preferred_element_type=jnp.float32) + b12_ref[...]

    # dropout(p=0.2): uint8 threshold compare; the 1/0.8 scale is folded
    # into w3_ref, so the kernel only needs a select.
    keep = bits_ref[...].astype(jnp.int32) >= DROP_THRESHOLD_U8
    h = jnp.where(keep, h, 0.0)

    # fc3: [20,15] @ [15,TB] -> [20,TB]
    out = jnp.dot(w3_ref[...], h,
                  preferred_element_type=jnp.float32) + b3_ref[...]
    out_ref[...] = out.astype(out_ref.dtype)


def prepare_params(w1, b1, w2, b2, w3, b3):
    """One-time prep.  Torch layout in: w* = (out, in), b* = (out,).

    Fuses fc1 into fc2 (valid only because there is no nonlinearity between
    them), moves everything to the transposed [out,in] @ [in,B] layout, and
    folds the 1/(1-p) inverted-dropout scale into fc3's weight.
    """
    f32 = jnp.float32
    w1, w2, w3 = w1.astype(f32), w2.astype(f32), w3.astype(f32)
    b1, b2, b3 = b1.astype(f32), b2.astype(f32), b3.astype(f32)
    w12t = w2 @ w1                               # [15, 6]
    b12 = (w2 @ b1 + b2).reshape(-1, 1)          # [15, 1]
    w3s = w3 * (1.0 / (1.0 - DROP_P))            # [20, 15]
    b3c = b3.reshape(-1, 1)                      # [20, 1]
    return w12t, b12, w3s, b3c


def _tiling(B, batch_tile):
    """Choose (TB, Bp): TB is the lane-axis batch tile (multiple of 128)."""
    Bp128 = _round_up(B, 128)
    TB = min(int(batch_tile), Bp128)
    # Prefer >= 2 grid steps on larger batches so the "parallel" axis can be
    # sharded across both v7x TensorCores (no effect on single-TC v5e/v6e).
    if Bp128 <= TB and Bp128 >= 512:
        TB = _round_up((Bp128 + 1) // 2, 128)
    Bp = _round_up(B, TB)
    return TB, Bp


@functools.partial(jax.jit, static_argnames=("batch_tile",))
def encoder_forward(x, params, dropout_key, batch_tile=8192):
    """x: [B, 6] float32.  params: output of prepare_params.  Returns [B, 20] f32."""
    w12t, b12, w3s, b3 = params
    B, d_in = x.shape
    d_h = w12t.shape[0]    # 15
    d_out = w3s.shape[0]   # 20

    TB, Bp = _tiling(B, batch_tile)
    nb = Bp // TB

    # Lane-dense transposed layout: batch on the 128-lane axis.
    xt = jnp.pad(x.astype(jnp.float32), ((0, Bp - B), (0, 0))).T       # [6, Bp]
    # uint8 dropout bits, distinct per (feature, row) by construction.
    bits = jax.random.bits(dropout_key, (d_h, Bp), dtype=jnp.uint8)    # [15, Bp]

    out_t = pl.pallas_call(
        encoder_kernel,
        # NOTE: could emit bfloat16 here for another ~2x on output traffic if
        # the consumer tolerates it; kept f32 to match the module.
        out_shape=jax.ShapeDtypeStruct((d_out, Bp), jnp.float32),
        grid_spec=pltpu.PrefetchScalarGridSpec(
            num_scalar_prefetch=0,
            grid=(nb,),
            in_specs=[
                pl.BlockSpec((d_in, TB), lambda i: (0, i)),   # x^T tile
                pl.BlockSpec((d_h, TB), lambda i: (0, i)),    # dropout bits tile
                pl.BlockSpec(w12t.shape, lambda i: (0, 0)),   # VMEM-resident weights
                pl.BlockSpec(b12.shape, lambda i: (0, 0)),
                pl.BlockSpec(w3s.shape, lambda i: (0, 0)),
                pl.BlockSpec(b3.shape, lambda i: (0, 0)),
            ],
            out_specs=pl.BlockSpec((d_out, TB), lambda i: (0, i)),
        ),
        compiler_params=pltpu.CompilerParams(
            dimension_semantics=("parallel",)),   # shard batch tiles across TCs
    )(xt, bits, w12t, b12, w3s, b3)

    # Layout plumbing back to the module's [B, 20] interface; consumers that
    # accept [20, B] can use out_t directly and skip this transpose.
    return out_t[:, :B].T


def init_encoder_params(key, d_in=6):
    """Deterministic init mimicking nn.Linear's U(-1/sqrt(fan_in), 1/sqrt(fan_in))."""
    sizes = [(10, d_in), (15, 10), (20, 15)]
    params = []
    for (fan_out, fan_in) in sizes:
        key, kw, kb = jax.random.split(key, 3)
        bound = 1.0 / (fan_in ** 0.5)
        w = jax.random.uniform(kw, (fan_out, fan_in), jnp.float32, -bound, bound)
        b = jax.random.uniform(kb, (fan_out,), jnp.float32, -bound, bound)
        params += [w, b]
    return params


if __name__ == "__main__":
    key = jax.random.PRNGKey(0)
    key, kx, kdrop = jax.random.split(key, 3)

    B, D_in = 8, 6
    x = jax.random.normal(kx, (B, D_in), jnp.float32)

    w1, b1, w2, b2, w3, b3 = init_encoder_params(key, D_in)
    prepped = prepare_params(w1, b1, w2, b2, w3, b3)

    out = encoder_forward(x, prepped, kdrop)
    out = jax.block_until_ready(out)

    assert out.shape == (B, 20), out.shape
    assert out.dtype == jnp.float32, out.dtype
    assert bool(jnp.all(jnp.isfinite(out))), "non-finite output"

    # Pure-JAX reference using the SAME dropout bits (fp tolerance only,
    # since fc1/fc2 fusion reorders fp accumulation slightly).
    _, Bp = _tiling(B, 8192)
    bits_ref = jax.random.bits(kdrop, (15, Bp), dtype=jnp.uint8)[:, :B]   # [15, B]
    h = x @ w1.T + b1
    h = h @ w2.T + b2
    keep = bits_ref.T >= DROP_THRESHOLD_U8
    h = jnp.where(keep, h / (1.0 - DROP_P), 0.0)
    ref = h @ w3.T + b3
    assert bool(jnp.allclose(out, ref, atol=1e-4, rtol=1e-4)), "mismatch vs reference"

    print("KERNEL_OK")
</pallas_src>

<mosaic_0001>
module attributes {stable_mosaic.version = 11 : i64} {
  func.func @encoder_kernel(%arg0: i32, %arg1: memref<6x128xf32, #tpu.memory_space<vmem>>, %arg2: memref<15x128xi8, #tpu.memory_space<vmem>>, %arg3: memref<15x6xf32, #tpu.memory_space<vmem>>, %arg4: memref<15x1xf32, #tpu.memory_space<vmem>>, %arg5: memref<20x15xf32, #tpu.memory_space<vmem>>, %arg6: memref<20x1xf32, #tpu.memory_space<vmem>>, %arg7: memref<20x128xf32, #tpu.memory_space<vmem>>) attributes {dimension_semantics = [#tpu.dimension_semantics<parallel>], iteration_bounds = array<i64: 1>, scalar_prefetch = 0 : i64, scratch_operands = 0 : i64, tpu.core_type = #tpu.core_type<tc>, window_params = [{transform_indices = @transform_0, window_bounds = array<i64: 6, 128>}, {transform_indices = @transform_1, window_bounds = array<i64: 15, 128>}, {pipeline_mode = #tpu.pipeline_mode<synchronous>, transform_indices = @transform_2, window_bounds = array<i64: 15, 6>}, {pipeline_mode = #tpu.pipeline_mode<synchronous>, transform_indices = @transform_3, window_bounds = array<i64: 15, 1>}, {pipeline_mode = #tpu.pipeline_mode<synchronous>, transform_indices = @transform_4, window_bounds = array<i64: 20, 15>}, {pipeline_mode = #tpu.pipeline_mode<synchronous>, transform_indices = @transform_5, window_bounds = array<i64: 20, 1>}, {transform_indices = @transform_6, window_bounds = array<i64: 20, 128>}]} {
    %c0 = arith.constant 0 : index
    %c0_0 = arith.constant 0 : index
    %0 = vector.load %arg3[%c0, %c0_0] : memref<15x6xf32, #tpu.memory_space<vmem>>, vector<15x6xf32>
    %c0_1 = arith.constant 0 : index
    %c0_2 = arith.constant 0 : index
    %1 = vector.load %arg1[%c0_1, %c0_2] : memref<6x128xf32, #tpu.memory_space<vmem>>, vector<6x128xf32>
    %cst = arith.constant dense<0.000000e+00> : vector<15x128xf32>
    %2 = tpu.matmul %0, %1, %cst {dimension_numbers = #tpu.dot_dimension_numbers<[1], [0], [0], [1], [0, 0, 1, 1], [], []>} : vector<15x6xf32>, vector<6x128xf32>, vector<15x128xf32> -> vector<15x128xf32>
    %c0_3 = arith.constant 0 : index
    %c0_4 = arith.constant 0 : index
    %3 = vector.load %arg4[%c0_3, %c0_4] : memref<15x1xf32, #tpu.memory_space<vmem>>, vector<15x1xf32>
    %4 = vector.broadcast %3 : vector<15x1xf32> to vector<15x128xf32>
    %5 = arith.addf %2, %4 : vector<15x128xf32>
    %c0_5 = arith.constant 0 : index
    %c0_6 = arith.constant 0 : index
    %6 = vector.load %arg2[%c0_5, %c0_6] : memref<15x128xi8, #tpu.memory_space<vmem>>, vector<15x128xi8>
    %7 = arith.extui %6 : vector<15x128xi8> to vector<15x128xi32>
    %c51_i32 = arith.constant 51 : i32
    %8 = vector.broadcast %c51_i32 : i32 to vector<15x128xi32>
    %9 = arith.cmpi sge, %7, %8 : vector<15x128xi32>
    %cst_7 = arith.constant 0.000000e+00 : f32
    %10 = vector.broadcast %cst_7 : f32 to vector<15x128xf32>
    %11 = arith.select %9, %5, %10 : vector<15x128xi1>, vector<15x128xf32>
    %c0_8 = arith.constant 0 : index
    %c0_9 = arith.constant 0 : index
    %12 = vector.load %arg5[%c0_8, %c0_9] : memref<20x15xf32, #tpu.memory_space<vmem>>, vector<20x15xf32>
    %cst_10 = arith.constant dense<0.000000e+00> : vector<20x128xf32>
    %13 = tpu.matmul %12, %11, %cst_10 {dimension_numbers = #tpu.dot_dimension_numbers<[1], [0], [0], [1], [0, 0, 1, 1], [], []>} : vector<20x15xf32>, vector<15x128xf32>, vector<20x128xf32> -> vector<20x128xf32>
    %c0_11 = arith.constant 0 : index
    %c0_12 = arith.constant 0 : index
    %14 = vector.load %arg6[%c0_11, %c0_12] : memref<20x1xf32, #tpu.memory_space<vmem>>, vector<20x1xf32>
    %15 = vector.broadcast %14 : vector<20x1xf32> to vector<20x128xf32>
    %16 = arith.addf %13, %15 : vector<20x128xf32>
    %c0_13 = arith.constant 0 : index
    %c0_14 = arith.constant 0 : index
    %17 = vector.load %arg7[%c0_13, %c0_14] : memref<20x128xf32, #tpu.memory_space<vmem>>, vector<20x128xf32>
    tpu.vector_store %arg7[%c0_13, %c0_14], %16 {strides = array<i32>} : memref<20x128xf32, #tpu.memory_space<vmem>>, vector<20x128xf32>,
    return
  }
  func.func @transform_0(%arg0: i32) -> (i32, i32) {
    %c0_i32 = arith.constant 0 : i32
    %c0_i32_0 = arith.constant 0 : i32
    return %c0_i32, %arg0 : i32, i32
  }
  func.func @transform_1(%arg0: i32) -> (i32, i32) {
    %c0_i32 = arith.constant 0 : i32
    %c0_i32_0 = arith.constant 0 : i32
    return %c0_i32, %arg0 : i32, i32
  }
  func.func @transform_2(%arg0: i32) -> (i32, i32) {
    %c0_i32 = arith.constant 0 : i32
    %c0_i32_0 = arith.constant 0 : i32
    %c0_i32_1 = arith.constant 0 : i32
    return %c0_i32, %c0_i32_0 : i32, i32
  }
  func.func @transform_3(%arg0: i32) -> (i32, i32) {
    %c0_i32 = arith.constant 0 : i32
    %c0_i32_0 = arith.constant 0 : i32
    %c0_i32_1 = arith.constant 0 : i32
    return %c0_i32, %c0_i32_0 : i32, i32
  }
  func.func @transform_4(%arg0: i32) -> (i32, i32) {
    %c0_i32 = arith.constant 0 : i32
    %c0_i32_0 = arith.constant 0 : i32
    %c0_i32_1 = arith.constant 0 : i32
    return %c0_i32, %c0_i32_0 : i32, i32
  }
  func.func @transform_5(%arg0: i32) -> (i32, i32) {
    %c0_i32 = arith.constant 0 : i32
    %c0_i32_0 = arith.constant 0 : i32
    %c0_i32_1 = arith.constant 0 : i32
    return %c0_i32, %c0_i32_0 : i32, i32
  }
  func.func @transform_6(%arg0: i32) -> (i32, i32) {
    %c0_i32 = arith.constant 0 : i32
    %c0_i32_0 = arith.constant 0 : i32
    return %c0_i32, %arg0 : i32, i32
  }
}

</mosaic_0001>

<llo_original>
// kernel: encoder_forward.1
$region0: #{encoder_forward.1}
  #allocation0 [shape = 'u32[]', space=smem, size = 0x4, offset = 0x4, fixed_abs, tag = 'smem constant byte address 0x4 - core index']
  #allocation1 [shape = 'u32[144,128]{1,0:T(1,128)}', space=vmem, size = 0x12000, scoped, tag = 'internal scratch']
  %s0 = inlined_call_operand.vmem [shape: f32[6,128], index: 0, kind: input, shape index: {}]
  %s1 = inlined_call_operand.vmem [shape: u8[15,128], index: 1, kind: input, shape index: {}]
  %s2 = inlined_call_operand.vmem [shape: f32[15,6], index: 2, kind: input, shape index: {}]
  %s3 = inlined_call_operand.vmem [shape: f32[15,1], index: 3, kind: input, shape index: {}]
  %s4 = inlined_call_operand.vmem [shape: f32[20,15], index: 4, kind: input, shape index: {}]
  %s5 = inlined_call_operand.vmem [shape: f32[20,1], index: 5, kind: input, shape index: {}]
  %s6 = inlined_call_operand.vmem [shape: f32[20,128], index: 6, kind: output, shape index: {}]
  %s7 = sld [smem:[#allocation0]]
  $region34: #{encoder_forward.1} parent=0
    _
  %s9 = ssub.s32 1, %s7
  %s10 = scalar_select 0, %s9, %s7
  // Predicated region
  $region2: #{encoder_forward.1} parent=0 // pred_check
    _
  $region3: #{encoder_forward.1} parent=0 // pred_check_branch
    %12 = sbr.rel (0) target = $region5
  $region4: #{encoder_forward.1} parent=0 // pred_region
    _
  $region5: #{encoder_forward.1} parent=0 // pred_fallthru
    _
  // Predicated region
  $region6: #{encoder_forward.1} parent=0 // pred_check
    _
  $region7: #{encoder_forward.1} parent=0 // pred_check_branch
    %14 = sbr.rel (0) target = $region9
  $region8: #{encoder_forward.1} parent=0 // pred_region
    _
  $region9: #{encoder_forward.1} parent=0 // pred_fallthru
    _
  // Predicated region
  $region10: #{encoder_forward.1} parent=0 // pred_check
    _
  $region11: #{encoder_forward.1} parent=0 // pred_check_branch
    %16 = sbr.rel (0) target = $region13
  $region12: #{encoder_forward.1} parent=0 // pred_region
    _
  $region13: #{encoder_forward.1} parent=0 // pred_fallthru
    _
  // Predicated region
  $region14: #{encoder_forward.1} parent=0 // pred_check
    _
  $region15: #{encoder_forward.1} parent=0 // pred_check_branch
    %18 = sbr.rel (0) target = $region17
  $region16: #{encoder_forward.1} parent=0 // pred_region
    _
  $region17: #{encoder_forward.1} parent=0 // pred_fallthru
    _
  // Predicated region
  $region18: #{encoder_forward.1} parent=0 // pred_check
    _
  $region19: #{encoder_forward.1} parent=0 // pred_check_branch
    %20 = sbr.rel (0) target = $region21
  $region20: #{encoder_forward.1} parent=0 // pred_region
    _
  $region21: #{encoder_forward.1} parent=0 // pred_fallthru
    _
  // Predicated region
  $region22: #{encoder_forward.1} parent=0 // pred_check
    _
  $region23: #{encoder_forward.1} parent=0 // pred_check_branch
    %22 = sbr.rel (0) target = $region25
  $region24: #{encoder_forward.1} parent=0 // pred_region
    _
  $region25: #{encoder_forward.1} parent=0 // pred_fallthru
    _
  %v23 = vld [vmem:[%s2] sm:$0xff]
  %v24 = vld [vmem:[%s2 + $0x8] sm:$0x7f]
  %v25 = vld [vmem:[%s0] sm:$0x3f]
  %v26 = vld [vmem:[%s3] sm:$0xff]
  %v27 = vld [vmem:[%s3 + $0x8] sm:$0x7f]
  %29 = vset.pattern.permute.xlu0 0
  %30 = vperm.xlu0 %29, %v26
  %v31 = vpop.permute.xlu0 %30
  %34 = vset.pattern.permute.xlu0 0
  %35 = vperm.xlu0 %34, %v27
  %v36 = vpop.permute.xlu0 %35
  %vm38 = vcmask 48128
  %v40 = vsel %vm38, %v23, 0
  %v43 = vsel %vm38, %v24, 0
  %vm45 = vcmask 1045504
  %v47 = vsel %vm45, %v25, 0
  %49 = vmatprep.subr.mxu0 0.0
  %50 = vmatpush1.msra.mxu0 %v47
  %51 = vmatprep.subr.mxu0 0.0
  %52 = vmatpush1.msra.mxu0 0.0
  %53 = vmatprep.subr.mxu0 0.0
  %54 = vmatpush1.msra.mxu0 0.0
  %55 = vmatprep.subr.mxu0 0.0
  %56 = vmatpush1.msra.mxu0 0.0
  %57 = vmatprep.subr.mxu0 0.0
  %58 = vmatpush1.msra.mxu0 0.0
  %59 = vmatprep.subr.mxu0 0.0
  %60 = vmatpush1.msra.mxu0 0.0
  %61 = vmatprep.subr.mxu0 0.0
  %62 = vmatpush1.msra.mxu0 0.0
  %63 = vmatprep.subr.mxu0 0.0
  %64 = vmatpush1.msra.mxu0 0.0
  %65 = vmatprep.subr.mxu0 0.0
  %66 = vmatpush1.msra.mxu0 0.0
  %67 = vmatprep.subr.mxu0 0.0
  %68 = vmatpush1.msra.mxu0 0.0
  %69 = vmatprep.subr.mxu0 0.0
  %70 = vmatpush1.msra.mxu0 0.0
  %71 = vmatprep.subr.mxu0 0.0
  %72 = vmatpush1.msra.mxu0 0.0
  %73 = vmatprep.subr.mxu0 0.0
  %74 = vmatpush1.msra.mxu0 0.0
  %75 = vmatprep.subr.mxu0 0.0
  %76 = vmatpush1.msra.mxu0 0.0
  %77 = vmatprep.subr.mxu0 0.0
  %78 = vmatpush1.msra.mxu0 0.0
  %79 = vmatprep.subr.mxu0 0.0
  %80 = vmatpush1.msra.mxu0 0.0
  %81 = vmatprep.subr.mxu0 0.0
  %82 = vmatpush1.msra.mxu0 0.0
  %83 = vmatprep.subr.mxu0 0.0
  %84 = vmatpush1.msra.mxu0 0.0
  %85 = vmatprep.subr.mxu0 0.0
  %86 = vmatpush1.msra.mxu0 0.0
  %87 = vmatprep.subr.mxu0 0.0
  %88 = vmatpush1.msra.mxu0 0.0
  %89 = vmatprep.subr.mxu0 0.0
  %90 = vmatpush1.msra.mxu0 0.0
  %91 = vmatprep.subr.mxu0 0.0
  %92 = vmatpush1.msra.mxu0 0.0
  %93 = vmatprep.subr.mxu0 0.0
  %94 = vmatpush1.msra.mxu0 0.0
  %95 = vmatprep.subr.mxu0 0.0
  %96 = vmatpush1.msra.mxu0 0.0
  %97 = vmatprep.subr.mxu0 0.0
  %98 = vmatpush1.msra.mxu0 0.0
  %99 = vmatprep.subr.mxu0 0.0
  %100 = vmatpush1.msra.mxu0 0.0
  %101 = vmatprep.subr.mxu0 0.0
  %102 = vmatpush1.msra.mxu0 0.0
  %103 = vmatprep.subr.mxu0 0.0
  %104 = vmatpush1.msra.mxu0 0.0
  %105 = vmatprep.subr.mxu0 0.0
  %106 = vmatpush1.msra.mxu0 0.0
  %107 = vmatprep.subr.mxu0 0.0
  %108 = vmatpush1.msra.mxu0 0.0
  %109 = vmatprep.subr.mxu0 0.0
  %110 = vmatpush1.msra.mxu0 0.0
  %111 = vmatprep.subr.mxu0 0.0
  %112 = vmatpush1.msra.mxu0 0.0
  %113 = vmatprep.mubr.f32.mxu0 0.0
  %114 = vmatmul.mubr.f32.gmra.mrb[0].mxu0 %v40
  %v115 = vpop.f32.mrb[0].mxu0
  %v116 = vadd.f32 %v31, %v115
  %v117 = vpop.f32.mrb[0].mxu0
  %118 = vmatprep.mubr.f32.mxu0 0.0
  %119 = vmatmul.mubr.f32.gmra.mrb[0].mxu0 %v43
  %v120 = vpop.f32.mrb[0].mxu0
  %v121 = vadd.f32 %v36, %v120
  %v122 = vpop.f32.mrb[0].mxu0
  %123 = vdwg.mxu0
  %v124 = vld [vmem:[%s1] sm:$0x3]
  %v125 = vld [vmem:[%s1 + $0x2] sm:$0x3]
  %v126 = vunpack.c.0.s8 %v124
  %v127 = vunpack.c.0.s8 %v125
  %v128 = vand.u32 %v126, 255
  %v129 = vand.u32 %v127, 255
  %vm130 = vcmp.ge.s32.totalorder %v128, 51
  %vm131 = vcmp.ge.s32.totalorder %v129, 51
  %v132 = vsel %vm130, %v116, 0.0
  %v133 = vsel %vm131, %v121, 0.0
  %v134 = vld [vmem:[%s4] sm:$0xff]
  %v135 = vld [vmem:[%s4 + $0x8] sm:$0xff]
  %v136 = vld [vmem:[%s4 + $0x10] sm:$0xf]
  %v137 = vld [vmem:[%s5] sm:$0xff]
  %v138 = vld [vmem:[%s5 + $0x8] sm:$0xff]
  %v139 = vld [vmem:[%s5 + $0x10] sm:$0xf]
  %141 = vset.pattern.permute.xlu0 0
  %142 = vperm.xlu0 %141, %v137
  %v143 = vpop.permute.xlu0 %142
  %146 = vset.pattern.permute.xlu0 0
  %147 = vperm.xlu0 %146, %v138
  %v148 = vpop.permute.xlu0 %147
  %151 = vset.pattern.permute.xlu0 0
  %152 = vperm.xlu0 %151, %v139
  %v153 = vpop.permute.xlu0 %152
  %vm155 = vcmask 121856
  %v157 = vsel %vm155, %v134, 0
  %v160 = vsel %vm155, %v135, 0
  %v163 = vsel %vm155, %v136, 0
  %vm165 = vcmask 1046528
  %v167 = vsel %vm165, %v133, 0
  %169 = vmatprep.subr.mxu0 0.0
  %170 = vmatpush1.msra.mxu0 %v132
  %171 = vmatprep.subr.mxu0 0.0
  %172 = vmatpush1.msra.mxu0 %v167
  %173 = vmatprep.subr.mxu0 0.0
  %174 = vmatpush1.msra.mxu0 0.0
  %175 = vmatprep.subr.mxu0 0.0
  %176 = vmatpush1.msra.mxu0 0.0
  %177 = vmatprep.subr.mxu0 0.0
  %178 = vmatpush1.msra.mxu0 0.0
  %179 = vmatprep.subr.mxu0 0.0
  %180 = vmatpush1.msra.mxu0 0.0
  %181 = vmatprep.subr.mxu0 0.0
  %182 = vmatpush1.msra.mxu0 0.0
  %183 = vmatprep.subr.mxu0 0.0
  %184 = vmatpush1.msra.mxu0 0.0
  %185 = vmatprep.subr.mxu0 0.0
  %186 = vmatpush1.msra.mxu0 0.0
  %187 = vmatprep.subr.mxu0 0.0
  %188 = vmatpush1.msra.mxu0 0.0
  %189 = vmatprep.subr.mxu0 0.0
  %190 = vmatpush1.msra.mxu0 0.0
  %191 = vmatprep.subr.mxu0 0.0
  %192 = vmatpush1.msra.mxu0 0.0
  %193 = vmatprep.subr.mxu0 0.0
  %194 = vmatpush1.msra.mxu0 0.0
  %195 = vmatprep.subr.mxu0 0.0
  %196 = vmatpush1.msra.mxu0 0.0
  %197 = vmatprep.subr.mxu0 0.0
  %198 = vmatpush1.msra.mxu0 0.0
  %199 = vmatprep.subr.mxu0 0.0
  %200 = vmatpush1.msra.mxu0 0.0
  %201 = vmatprep.subr.mxu0 0.0
  %202 = vmatpush1.msra.mxu0 0.0
  %203 = vmatprep.subr.mxu0 0.0
  %204 = vmatpush1.msra.mxu0 0.0
  %205 = vmatprep.subr.mxu0 0.0
  %206 = vmatpush1.msra.mxu0 0.0
  %207 = vmatprep.subr.mxu0 0.0
  %208 = vmatpush1.msra.mxu0 0.0
  %209 = vmatprep.subr.mxu0 0.0
  %210 = vmatpush1.msra.mxu0 0.0
  %211 = vmatprep.subr.mxu0 0.0
  %212 = vmatpush1.msra.mxu0 0.0
  %213 = vmatprep.subr.mxu0 0.0
  %214 = vmatpush1.msra.mxu0 0.0
  %215 = vmatprep.subr.mxu0 0.0
  %216 = vmatpush1.msra.mxu0 0.0
  %217 = vmatprep.subr.mxu0 0.0
  %218 = vmatpush1.msra.mxu0 0.0
  %219 = vmatprep.subr.mxu0 0.0
  %220 = vmatpush1.msra.mxu0 0.0
  %221 = vmatprep.subr.mxu0 0.0
  %222 = vmatpush1.msra.mxu0 0.0
  %223 = vmatprep.subr.mxu0 0.0
  %224 = vmatpush1.msra.mxu0 0.0
  %225 = vmatprep.subr.mxu0 0.0
  %226 = vmatpush1.msra.mxu0 0.0
  %227 = vmatprep.subr.mxu0 0.0
  %228 = vmatpush1.msra.mxu0 0.0
  %229 = vmatprep.subr.mxu0 0.0
  %230 = vmatpush1.msra.mxu0 0.0
  %231 = vmatprep.subr.mxu0 0.0
  %232 = vmatpush1.msra.mxu0 0.0
  %233 = vmatprep.mubr.f32.mxu0 0.0
  %234 = vmatmul.mubr.f32.gmra.mrb[0].mxu0 %v157
  %v235 = vpop.f32.mrb[0].mxu0
  %v236 = vadd.f32 %v143, %v235
  %v237 = vpop.f32.mrb[0].mxu0
  %238 = vmatprep.mubr.f32.mxu0 0.0
  %239 = vmatmul.mubr.f32.gmra.mrb[0].mxu0 %v160
  %v240 = vpop.f32.mrb[0].mxu0
  %v241 = vadd.f32 %v148, %v240
  %v242 = vpop.f32.mrb[0].mxu0
  %243 = vmatprep.mubr.f32.mxu0 0.0
  %244 = vmatmul.mubr.f32.gmra.mrb[0].mxu0 %v163
  %v245 = vpop.f32.mrb[0].mxu0
  %v246 = vadd.f32 %v153, %v245
  %v247 = vpop.f32.mrb[0].mxu0
  %248 = vdwg.mxu0
  %249 = vst [vmem:[%s6] sm:$0xff] %v236
  %250 = vst [vmem:[%s6 + $0x8] sm:$0xff] %v241
  %251 = vst [vmem:[%s6 + $0x10] sm:$0xf] %v246
  // Predicated region
  $region26: #{encoder_forward.1} parent=0 // pred_check
    _
  $region27: #{encoder_forward.1} parent=0 // pred_check_branch
    %253 = sbr.rel (0) target = $region29
  $region28: #{encoder_forward.1} parent=0 // pred_region
    _
  $region29: #{encoder_forward.1} parent=0 // pred_fallthru
    _
  // Predicated region
  $region30: #{encoder_forward.1} parent=0 // pred_check
    _
  $region31: #{encoder_forward.1} parent=0 // pred_check_branch
    %255 = sbr.rel (0) target = $region33
  $region32: #{encoder_forward.1} parent=0 // pred_region
    _
  $region33: #{encoder_forward.1} parent=0 // pred_fallthru
    _

</llo_original>
